<compile_context>
chip_gen: v7x
topology: tpu7x:2x2x1
jax: 0.10.0
libtpu: 0.0.40
codegen_flags: <defaults>
</compile_context>

<pallas_src>
import jax
import jax.numpy as jnp
from jax.experimental import pallas as pl
from jax.experimental.pallas import tpu as pltpu


def _round_up(x, m):
    return (x + m - 1) // m * m


def _choose_batch_tiling(batch):
    """Returns (padded_batch, batch_tile)."""
    bp = _round_up(max(batch, 8), 8)
    if bp <= 128:
        return bp, bp
    bp = _round_up(bp, 128)
    return bp, 128


# ----------------------------------------------------------------------------
# Kernel
# ----------------------------------------------------------------------------
def gru_cell_kernel(x_ref, h_ref, wi_ref, wh_ref, bi_ref, bh_ref, hnew_ref):
    """Fused GRU cell step.

    x_ref  : (BT, IP)      input (any float dtype; cast to bf16 for MXU)
    h_ref  : (BT, HP)      previous hidden (f32; exact value used in blend)
    wi_ref : (IP, 3*HP)    bf16 packed [W_ir^T | W_iz^T | W_in^T]
    wh_ref : (HP, 3*HP)    bf16 packed [W_hr^T | W_hz^T | W_hn^T]
    bi_ref : (1, 3*HP)     f32  packed [b_ir | b_iz | b_in]
    bh_ref : (1, 3*HP)     f32  packed [b_hr | b_hz | b_hn]
    hnew   : (BT, HP)      output, caller's dtype
    """
    HP = hnew_ref.shape[-1]
    cdt = wi_ref.dtype

    h_f32 = h_ref[...].astype(jnp.float32)

    # Two dense bf16 MXU passes, f32 accumulation, f32 bias adds.
    gi = jnp.dot(x_ref[...].astype(cdt), wi_ref[...],
                 preferred_element_type=jnp.float32) + bi_ref[...]
    gh = jnp.dot(h_f32.astype(cdt), wh_ref[...],
                 preferred_element_type=jnp.float32) + bh_ref[...]

    # Lane-aligned (multiple-of-128) gate bands.
    r = jax.nn.sigmoid(gi[:, 0 * HP:1 * HP] + gh[:, 0 * HP:1 * HP])
    z = jax.nn.sigmoid(gi[:, 1 * HP:2 * HP] + gh[:, 1 * HP:2 * HP])
    n = jnp.tanh(gi[:, 2 * HP:3 * HP] + r * gh[:, 2 * HP:3 * HP])

    hnew_ref[...] = (n + z * (h_f32 - n)).astype(hnew_ref.dtype)


# ----------------------------------------------------------------------------
# Parameter handling
# ----------------------------------------------------------------------------
def init_gru_params(key, input_size, hidden_size, dtype=jnp.float32):
    """PyTorch-layout nn.GRUCell parameters, U(-1/sqrt(H), 1/sqrt(H))."""
    k1, k2, k3, k4 = jax.random.split(key, 4)
    bound = float(hidden_size) ** -0.5
    G = 3 * hidden_size
    w_ih = jax.random.uniform(k1, (G, input_size), dtype, -bound, bound)
    w_hh = jax.random.uniform(k2, (G, hidden_size), dtype, -bound, bound)
    b_ih = jax.random.uniform(k3, (G,), dtype, -bound, bound)
    b_hh = jax.random.uniform(k4, (G,), dtype, -bound, bound)
    return w_ih, w_hh, b_ih, b_hh


def pack_gru_params(w_ih, w_hh, b_ih, b_hh, *, compute_dtype=jnp.bfloat16):
    """Pack PyTorch-layout GRUCell params into two dense, lane-padded matrices.

    Returns:
      w_i  : (IP, 3*HP) compute_dtype  cols [gHP : gHP+H) hold W_i{r,z,n}^T
      w_h  : (HP, 3*HP) compute_dtype  cols [gHP : gHP+H) hold W_h{r,z,n}^T
      b_i  : (1, 3*HP)  float32        [b_ir | b_iz | b_in]
      b_h  : (1, 3*HP)  float32        [b_hr | b_hz | b_hn]
      dims : (I, H, IP, HP)
    """
    G, I = w_ih.shape
    H = G // 3
    IP = _round_up(I, 128)
    HP = _round_up(H, 128)

    w_ih = w_ih.astype(jnp.float32)
    w_hh = w_hh.astype(jnp.float32)

    w_i = jnp.zeros((IP, 3 * HP), jnp.float32)
    w_h = jnp.zeros((HP, 3 * HP), jnp.float32)
    b_i = jnp.zeros((1, 3 * HP), jnp.float32)
    b_h = jnp.zeros((1, 3 * HP), jnp.float32)
    for g in range(3):
        w_i = w_i.at[:I, g * HP:g * HP + H].set(w_ih[g * H:(g + 1) * H, :].T)
        w_h = w_h.at[:H, g * HP:g * HP + H].set(w_hh[g * H:(g + 1) * H, :].T)
        b_i = b_i.at[0, g * HP:g * HP + H].set(b_ih[g * H:(g + 1) * H].astype(jnp.float32))
        b_h = b_h.at[0, g * HP:g * HP + H].set(b_hh[g * H:(g + 1) * H].astype(jnp.float32))

    return (w_i.astype(compute_dtype), w_h.astype(compute_dtype),
            b_i, b_h, (I, H, IP, HP))


# ----------------------------------------------------------------------------
# Wrapper (SimpleGRUCell.forward -> (new_hidden, old_hidden))
# ----------------------------------------------------------------------------
def simple_gru_cell_forward(x, h, w_i, w_h, b_i, b_h, dims):
    I, H, IP, HP = dims
    B = x.shape[0]
    out_dtype = x.dtype
    compute_dtype = w_i.dtype

    BP, BT = _choose_batch_tiling(B)
    aligned = (B == BP) and (I == IP) and (H == HP)

    if aligned:
        # No wrapper-side pad / cast / slice passes.
        x_in, h_in = x, h
    else:
        x_in = jnp.zeros((BP, IP), compute_dtype).at[:B, :I].set(
            x.astype(compute_dtype))
        h_in = jnp.zeros((BP, HP), h.dtype).at[:B, :H].set(h)

    grid = (BP // BT,)

    # --- VMEM plan (weights single-buffered; activations double-buffered) ---
    x_it = jnp.dtype(x_in.dtype).itemsize
    h_it = jnp.dtype(h_in.dtype).itemsize
    o_it = jnp.dtype(out_dtype).itemsize
    w_it = jnp.dtype(compute_dtype).itemsize
    vmem_bytes = (
        IP * 3 * HP * w_it          # W_i   (Buffered(1), fetched once)
        + HP * 3 * HP * w_it        # W_h   (Buffered(1))
        + 2 * 3 * HP * 4            # biases
        + 2 * BT * IP * x_it        # x tiles  (double-buffered)
        + 2 * BT * HP * h_it        # h tiles
        + 2 * BT * HP * o_it        # out tiles
        + 2 * BT * 3 * HP * 4       # gi / gh f32 intermediates
        + 6 * BT * HP * 4           # r / z / n / blend temporaries
    )
    vmem_limit = int(min(max(2 * vmem_bytes, 16 << 20), 64 << 20))

    # Advisory cost estimate (dense packing, no zero bands).
    flops = 2 * BP * IP * 3 * HP + 2 * BP * HP * 3 * HP + 12 * BP * HP
    transcendentals = 3 * BP * HP
    bytes_accessed = (
        x_in.size * x_it + h_in.size * h_it
        + w_i.size * w_it + w_h.size * w_it
        + (b_i.size + b_h.size) * 4
        + BP * HP * o_it
    )

    h_new_pad = pl.pallas_call(
        gru_cell_kernel,
        out_shape=jax.ShapeDtypeStruct((BP, HP), out_dtype),
        grid_spec=pltpu.PrefetchScalarGridSpec(
            num_scalar_prefetch=0,
            grid=grid,
            in_specs=[
                pl.BlockSpec((BT, IP), lambda i: (i, 0)),        # x
                pl.BlockSpec((BT, HP), lambda i: (i, 0)),        # h (f32)
                pl.BlockSpec((IP, 3 * HP), lambda i: (0, 0),
                             pipeline_mode=pl.Buffered(1)),      # W_i
                pl.BlockSpec((HP, 3 * HP), lambda i: (0, 0),
                             pipeline_mode=pl.Buffered(1)),      # W_h
                pl.BlockSpec((1, 3 * HP), lambda i: (0, 0),
                             pipeline_mode=pl.Buffered(1)),      # b_i
                pl.BlockSpec((1, 3 * HP), lambda i: (0, 0),
                             pipeline_mode=pl.Buffered(1)),      # b_h
            ],
            out_specs=pl.BlockSpec((BT, HP), lambda i: (i, 0)),
        ),
        compiler_params=pltpu.CompilerParams(
            dimension_semantics=("parallel",),
            vmem_limit_bytes=vmem_limit,
        ),
        cost_estimate=pl.CostEstimate(
            flops=flops,
            transcendentals=transcendentals,
            bytes_accessed=bytes_accessed,
        ),
    )(x_in, h_in, w_i, w_h, b_i, b_h)

    h_new = h_new_pad if aligned else h_new_pad[:B, :H]
    # Module returns (new_hidden, old_hidden).
    return h_new, h


# ----------------------------------------------------------------------------
# Pure-JAX reference (uses the *unpacked* params -> also validates packing).
# Matches the kernel's numerics: bf16-cast x/h/W for the matmuls, f32 h blend.
# ----------------------------------------------------------------------------
def _reference_gru(x, h, w_ih, w_hh, b_ih, b_hh, compute_dtype=jnp.bfloat16):
    f32 = jnp.float32
    xq = x.astype(compute_dtype).astype(f32)
    hq = h.astype(compute_dtype).astype(f32)
    wi = w_ih.astype(compute_dtype).astype(f32)
    wh = w_hh.astype(compute_dtype).astype(f32)
    H = h.shape[-1]
    gi = xq @ wi.T + b_ih.astype(f32)
    gh = hq @ wh.T + b_hh.astype(f32)
    r = jax.nn.sigmoid(gi[:, :H] + gh[:, :H])
    z = jax.nn.sigmoid(gi[:, H:2 * H] + gh[:, H:2 * H])
    n = jnp.tanh(gi[:, 2 * H:] + r * gh[:, 2 * H:])
    return n + z * (h.astype(f32) - n)


def _run_case(key, batch_size, input_size, hidden_size, dtype=jnp.float32):
    k_x, k_h, k_p = jax.random.split(key, 3)
    x = jax.random.normal(k_x, (batch_size, input_size), dtype)
    h0 = jax.random.normal(k_h, (batch_size, hidden_size), dtype)

    w_ih, w_hh, b_ih, b_hh = init_gru_params(k_p, input_size, hidden_size, dtype)
    w_i, w_h, b_i, b_h, dims = pack_gru_params(w_ih, w_hh, b_ih, b_hh)

    fwd = jax.jit(
        lambda xx, hh: simple_gru_cell_forward(xx, hh, w_i, w_h, b_i, b_h, dims))
    h_new, h_old = fwd(x, h0)
    h_new = jax.block_until_ready(h_new)
    h_old = jax.block_until_ready(h_old)

    ref = _reference_gru(x, h0, w_ih, w_hh, b_ih, b_hh)

    assert h_new.shape == (batch_size, hidden_size)
    assert h_old.shape == (batch_size, hidden_size)
    assert jnp.array_equal(h_old, h0)
    err = float(jnp.max(jnp.abs(h_new.astype(jnp.float32) - ref)))
    assert jnp.allclose(h_new.astype(jnp.float32), ref, atol=1e-3, rtol=1e-3), err


if __name__ == "__main__":
    key = jax.random.PRNGKey(0)
    k1, k2 = jax.random.split(key, 2)

    # Padded path (shapes from the module's typical small config).
    _run_case(k1, batch_size=8, input_size=16, hidden_size=32)
    # Aligned fast path (no wrapper pad/slice passes).
    _run_case(k2, batch_size=16, input_size=128, hidden_size=128)

    print("KERNEL_OK")
</pallas_src>

<mosaic_0001>
module attributes {stable_mosaic.version = 11 : i64} {
  func.func @gru_cell_kernel(%arg0: i32, %arg1: memref<8x128xbf16, #tpu.memory_space<vmem>>, %arg2: memref<8x128xf32, #tpu.memory_space<vmem>>, %arg3: memref<128x384xbf16, #tpu.memory_space<vmem>>, %arg4: memref<128x384xbf16, #tpu.memory_space<vmem>>, %arg5: memref<1x384xf32, #tpu.memory_space<vmem>>, %arg6: memref<1x384xf32, #tpu.memory_space<vmem>>, %arg7: memref<8x128xf32, #tpu.memory_space<vmem>>) attributes {dimension_semantics = [#tpu.dimension_semantics<parallel>], iteration_bounds = array<i64: 1>, scalar_prefetch = 0 : i64, scratch_operands = 0 : i64, tpu.core_type = #tpu.core_type<tc>, window_params = [{transform_indices = @transform_0, window_bounds = array<i64: 8, 128>}, {transform_indices = @transform_1, window_bounds = array<i64: 8, 128>}, {pipeline_mode = #tpu.pipeline_mode<synchronous>, transform_indices = @transform_2, window_bounds = array<i64: 128, 384>}, {pipeline_mode = #tpu.pipeline_mode<synchronous>, transform_indices = @transform_3, window_bounds = array<i64: 128, 384>}, {pipeline_mode = #tpu.pipeline_mode<synchronous>, transform_indices = @transform_4, window_bounds = array<i64: 1, 384>}, {pipeline_mode = #tpu.pipeline_mode<synchronous>, transform_indices = @transform_5, window_bounds = array<i64: 1, 384>}, {transform_indices = @transform_6, window_bounds = array<i64: 8, 128>}]} {
    %c0 = arith.constant 0 : index
    %c0_0 = arith.constant 0 : index
    %0 = vector.load %arg2[%c0, %c0_0] : memref<8x128xf32, #tpu.memory_space<vmem>>, vector<8x128xf32>
    %c0_1 = arith.constant 0 : index
    %c0_2 = arith.constant 0 : index
    %1 = vector.load %arg1[%c0_1, %c0_2] : memref<8x128xbf16, #tpu.memory_space<vmem>>, vector<8x128xbf16>
    %c0_3 = arith.constant 0 : index
    %c0_4 = arith.constant 0 : index
    %2 = vector.load %arg3[%c0_3, %c0_4] : memref<128x384xbf16, #tpu.memory_space<vmem>>, vector<128x384xbf16>
    %cst = arith.constant dense<0.000000e+00> : vector<8x384xf32>
    %3 = tpu.matmul %1, %2, %cst {dimension_numbers = #tpu.dot_dimension_numbers<[1], [0], [0], [1], [0, 0, 1, 1], [], []>} : vector<8x128xbf16>, vector<128x384xbf16>, vector<8x384xf32> -> vector<8x384xf32>
    %c0_5 = arith.constant 0 : index
    %c0_6 = arith.constant 0 : index
    %4 = vector.load %arg5[%c0_5, %c0_6] : memref<1x384xf32, #tpu.memory_space<vmem>>, vector<1x384xf32>
    %5 = vector.broadcast %4 : vector<1x384xf32> to vector<8x384xf32>
    %6 = arith.addf %3, %5 : vector<8x384xf32>
    %7 = arith.truncf %0 : vector<8x128xf32> to vector<8x128xbf16>
    %c0_7 = arith.constant 0 : index
    %c0_8 = arith.constant 0 : index
    %8 = vector.load %arg4[%c0_7, %c0_8] : memref<128x384xbf16, #tpu.memory_space<vmem>>, vector<128x384xbf16>
    %cst_9 = arith.constant dense<0.000000e+00> : vector<8x384xf32>
    %9 = tpu.matmul %7, %8, %cst_9 {dimension_numbers = #tpu.dot_dimension_numbers<[1], [0], [0], [1], [0, 0, 1, 1], [], []>} : vector<8x128xbf16>, vector<128x384xbf16>, vector<8x384xf32> -> vector<8x384xf32>
    %c0_10 = arith.constant 0 : index
    %c0_11 = arith.constant 0 : index
    %10 = vector.load %arg6[%c0_10, %c0_11] : memref<1x384xf32, #tpu.memory_space<vmem>>, vector<1x384xf32>
    %11 = vector.broadcast %10 : vector<1x384xf32> to vector<8x384xf32>
    %12 = arith.addf %9, %11 : vector<8x384xf32>
    %13 = vector.extract_strided_slice %6 {offsets = [0, 0], sizes = [8, 128], strides = [1, 1]} : vector<8x384xf32> to vector<8x128xf32>
    %14 = vector.extract_strided_slice %12 {offsets = [0, 0], sizes = [8, 128], strides = [1, 1]} : vector<8x384xf32> to vector<8x128xf32>
    %15 = arith.addf %13, %14 : vector<8x128xf32>
    %16 = arith.negf %15 : vector<8x128xf32>
    %17 = math.exp %16 : vector<8x128xf32>
    %cst_12 = arith.constant 1.000000e+00 : f32
    %18 = vector.broadcast %cst_12 : f32 to vector<8x128xf32>
    %19 = arith.addf %18, %17 : vector<8x128xf32>
    %20 = arith.divf %18, %19 : vector<8x128xf32>
    %21 = vector.extract_strided_slice %6 {offsets = [0, 128], sizes = [8, 128], strides = [1, 1]} : vector<8x384xf32> to vector<8x128xf32>
    %22 = vector.extract_strided_slice %12 {offsets = [0, 128], sizes = [8, 128], strides = [1, 1]} : vector<8x384xf32> to vector<8x128xf32>
    %23 = arith.addf %21, %22 : vector<8x128xf32>
    %24 = arith.negf %23 : vector<8x128xf32>
    %25 = math.exp %24 : vector<8x128xf32>
    %cst_13 = arith.constant 1.000000e+00 : f32
    %26 = vector.broadcast %cst_13 : f32 to vector<8x128xf32>
    %27 = arith.addf %26, %25 : vector<8x128xf32>
    %28 = arith.divf %26, %27 : vector<8x128xf32>
    %29 = vector.extract_strided_slice %6 {offsets = [0, 256], sizes = [8, 128], strides = [1, 1]} : vector<8x384xf32> to vector<8x128xf32>
    %30 = vector.extract_strided_slice %12 {offsets = [0, 256], sizes = [8, 128], strides = [1, 1]} : vector<8x384xf32> to vector<8x128xf32>
    %31 = arith.mulf %20, %30 : vector<8x128xf32>
    %32 = arith.addf %29, %31 : vector<8x128xf32>
    %33 = math.tanh %32 : vector<8x128xf32>
    %34 = arith.subf %0, %33 : vector<8x128xf32>
    %35 = arith.mulf %28, %34 : vector<8x128xf32>
    %36 = arith.addf %33, %35 : vector<8x128xf32>
    %c0_14 = arith.constant 0 : index
    %c0_15 = arith.constant 0 : index
    %37 = vector.load %arg7[%c0_14, %c0_15] : memref<8x128xf32, #tpu.memory_space<vmem>>, vector<8x128xf32>
    tpu.vector_store %arg7[%c0_14, %c0_15], %36 {strides = array<i32>} : memref<8x128xf32, #tpu.memory_space<vmem>>, vector<8x128xf32>,
    return
  }
  func.func @transform_0(%arg0: i32) -> (i32, i32) {
    %c0_i32 = arith.constant 0 : i32
    %c0_i32_0 = arith.constant 0 : i32
    return %arg0, %c0_i32 : i32, i32
  }
  func.func @transform_1(%arg0: i32) -> (i32, i32) {
    %c0_i32 = arith.constant 0 : i32
    %c0_i32_0 = arith.constant 0 : i32
    return %arg0, %c0_i32 : i32, i32
  }
  func.func @transform_2(%arg0: i32) -> (i32, i32) {
    %c0_i32 = arith.constant 0 : i32
    %c0_i32_0 = arith.constant 0 : i32
    %c0_i32_1 = arith.constant 0 : i32
    return %c0_i32, %c0_i32_0 : i32, i32
  }
  func.func @transform_3(%arg0: i32) -> (i32, i32) {
    %c0_i32 = arith.constant 0 : i32
    %c0_i32_0 = arith.constant 0 : i32
    %c0_i32_1 = arith.constant 0 : i32
    return %c0_i32, %c0_i32_0 : i32, i32
  }
  func.func @transform_4(%arg0: i32) -> (i32, i32) {
    %c0_i32 = arith.constant 0 : i32
    %c0_i32_0 = arith.constant 0 : i32
    %c0_i32_1 = arith.constant 0 : i32
    return %c0_i32, %c0_i32_0 : i32, i32
  }
  func.func @transform_5(%arg0: i32) -> (i32, i32) {
    %c0_i32 = arith.constant 0 : i32
    %c0_i32_0 = arith.constant 0 : i32
    %c0_i32_1 = arith.constant 0 : i32
    return %c0_i32, %c0_i32_0 : i32, i32
  }
  func.func @transform_6(%arg0: i32) -> (i32, i32) {
    %c0_i32 = arith.constant 0 : i32
    %c0_i32_0 = arith.constant 0 : i32
    return %arg0, %c0_i32 : i32, i32
  }
}

</mosaic_0001>

<llo_original>
// kernel: _lambda_.1
$region0: #{_lambda_.1}
  #allocation0 [shape = 'u32[]', space=smem, size = 0x4, offset = 0x4, fixed_abs, tag = 'smem constant byte address 0x4 - core index']
  #allocation1 [shape = 'u32[144,128]{1,0:T(1,128)}', space=vmem, size = 0x12000, scoped, tag = 'internal scratch']
  %s0 = inlined_call_operand.vmem [shape: bf16[8,128], index: 0, kind: input, shape index: {}]
  %s1 = inlined_call_operand.vmem [shape: f32[8,128], index: 1, kind: input, shape index: {}]
  %s2 = inlined_call_operand.vmem [shape: bf16[128,384], index: 2, kind: input, shape index: {}]
  %s3 = inlined_call_operand.vmem [shape: bf16[128,384], index: 3, kind: input, shape index: {}]
  %s4 = inlined_call_operand.vmem [shape: f32[1,384], index: 4, kind: input, shape index: {}]
  %s5 = inlined_call_operand.vmem [shape: f32[1,384], index: 5, kind: input, shape index: {}]
  %s6 = inlined_call_operand.hbm [shape: f32[8,128], index: 6, kind: output, shape index: {}]
  %s7 = sld [smem:[#allocation0]]
  $region34: #{_lambda_.1} parent=0
    _
  %s9 = ssub.s32 1, %s7
  %s10 = scalar_select 0, %s9, %s7
  $region1: #{_lambda_.1} parent=0
    #allocation2 [shape = 'u8[4096]{0}', space=vmem, size = 0x1000, scoped, tag = 'output window, operand 0, single buffered']
    #allocation3 [shape = 's32[1]{0}', space=sflag, size = 0x4, scoped, tag = 'scoped memory for _lambda_.1']
    %11 = vsyncpa [#allocation3], 0
    // Predicated region
    $region2: #{_lambda_.1} parent=1 // pred_check
      _
    $region3: #{_lambda_.1} parent=1 // pred_check_branch
      %13 = sbr.rel (0) target = $region5
    $region4: #{_lambda_.1} parent=1 // pred_region
      _
    $region5: #{_lambda_.1} parent=1 // pred_fallthru
      _
    // Predicated region
    $region6: #{_lambda_.1} parent=1 // pred_check
      _
    $region7: #{_lambda_.1} parent=1 // pred_check_branch
      %15 = sbr.rel (0) target = $region9
    $region8: #{_lambda_.1} parent=1 // pred_region
      _
    $region9: #{_lambda_.1} parent=1 // pred_fallthru
      _
    // Predicated region
    $region10: #{_lambda_.1} parent=1 // pred_check
      _
    $region11: #{_lambda_.1} parent=1 // pred_check_branch
      %17 = sbr.rel (0) target = $region13
    $region12: #{_lambda_.1} parent=1 // pred_region
      _
    $region13: #{_lambda_.1} parent=1 // pred_fallthru
      _
    // Predicated region
    $region14: #{_lambda_.1} parent=1 // pred_check
      _
    $region15: #{_lambda_.1} parent=1 // pred_check_branch
      %19 = sbr.rel (0) target = $region17
    $region16: #{_lambda_.1} parent=1 // pred_region
      _
    $region17: #{_lambda_.1} parent=1 // pred_fallthru
      _
    // Predicated region
    $region18: #{_lambda_.1} parent=1 // pred_check
      _
    $region19: #{_lambda_.1} parent=1 // pred_check_branch
      %21 = sbr.rel (0) target = $region21
    $region20: #{_lambda_.1} parent=1 // pred_region
      _
    $region21: #{_lambda_.1} parent=1 // pred_fallthru
      _
    // Predicated region
    $region22: #{_lambda_.1} parent=1 // pred_check
      _
    $region23: #{_lambda_.1} parent=1 // pred_check_branch
      %23 = sbr.rel (0) target = $region25
    $region24: #{_lambda_.1} parent=1 // pred_region
      _
    $region25: #{_lambda_.1} parent=1 // pred_fallthru
      _
    %v25 = vld [vmem:[%s1] sm:$0xff]
    %v26 = vld [vmem:[%s0] sm:$0xf]
    %v27 = vld [vmem:[%s2] sm:$0xff]
    %v28 = vld [vmem:[%s2 + $0x8] sm:$0xf]
    %v29 = vld [vmem:[%s2 + $0xc] sm:$0xff]
    %v30 = vld [vmem:[%s2 + $0x14] sm:$0xf]
    %v31 = vld [vmem:[%s2 + $0x18] sm:$0xff]
    %v32 = vld [vmem:[%s2 + $0x20] sm:$0xf]
    %v33 = vld [vmem:[%s2 + $0x24] sm:$0xff]
    %v34 = vld [vmem:[%s2 + $0x2c] sm:$0xf]
    %v35 = vld [vmem:[%s2 + $0x30] sm:$0xff]
    %v36 = vld [vmem:[%s2 + $0x38] sm:$0xf]
    %v37 = vld [vmem:[%s2 + $0x3c] sm:$0xff]
    %v38 = vld [vmem:[%s2 + $0x44] sm:$0xf]
    %v39 = vld [vmem:[%s2 + $0x48] sm:$0xff]
    %v40 = vld [vmem:[%s2 + $0x50] sm:$0xf]
    %v41 = vld [vmem:[%s2 + $0x54] sm:$0xff]
    %v42 = vld [vmem:[%s2 + $0x5c] sm:$0xf]
    %v43 = vld [vmem:[%s2 + $0x60] sm:$0xff]
    %v44 = vld [vmem:[%s2 + $0x68] sm:$0xf]
    %v45 = vld [vmem:[%s2 + $0x6c] sm:$0xff]
    %v46 = vld [vmem:[%s2 + $0x74] sm:$0xf]
    %v47 = vld [vmem:[%s2 + $0x78] sm:$0xff]
    %v48 = vld [vmem:[%s2 + $0x80] sm:$0xf]
    %v49 = vld [vmem:[%s2 + $0x84] sm:$0xff]
    %v50 = vld [vmem:[%s2 + $0x8c] sm:$0xf]
    %v51 = vld [vmem:[%s2 + $0x90] sm:$0xff]
    %v52 = vld [vmem:[%s2 + $0x98] sm:$0xf]
    %v53 = vld [vmem:[%s2 + $0x9c] sm:$0xff]
    %v54 = vld [vmem:[%s2 + $0xa4] sm:$0xf]
    %v55 = vld [vmem:[%s2 + $0xa8] sm:$0xff]
    %v56 = vld [vmem:[%s2 + $0xb0] sm:$0xf]
    %v57 = vld [vmem:[%s2 + $0xb4] sm:$0xff]
    %v58 = vld [vmem:[%s2 + $0xbc] sm:$0xf]
    %v59 = vld [vmem:[%s4] sm:$0x7]
    %v61 = vlaneseq
    %v62 = vshrl.u32 %v61, 7
    %v63 = vsub.s32 0, %v62
    %v64 = vrot.slane %v59, %v63
    %v65 = vlaneseq
    %v66 = vshrl.u32 %v65, 7
    %v67 = vsub.s32 1, %v66
    %v68 = vrot.slane %v59, %v67
    %v69 = vlaneseq
    %v70 = vshrl.u32 %v69, 7
    %v71 = vsub.s32 2, %v70
    %v72 = vrot.slane %v59, %v71
    %v108 = vunpack.c.l.b16 %v27
    %v109 = vunpack.c.h.b16 %v27
    %v110 = vunpack.c.l.b16 %v28
    %v111 = vunpack.c.l.b16 %v29
    %v112 = vunpack.c.h.b16 %v29
    %v113 = vunpack.c.l.b16 %v30
    %v114 = vunpack.c.l.b16 %v31
    %v115 = vunpack.c.h.b16 %v31
    %v116 = vunpack.c.l.b16 %v32
    %v117 = vunpack.c.l.b16 %v33
    %v118 = vunpack.c.h.b16 %v33
    %v119 = vunpack.c.l.b16 %v34
    %v120 = vunpack.c.l.b16 %v35
    %v121 = vunpack.c.h.b16 %v35
    %v122 = vunpack.c.l.b16 %v36
    %v123 = vunpack.c.l.b16 %v37
    %v124 = vunpack.c.h.b16 %v37
    %v125 = vunpack.c.l.b16 %v38
    %v126 = vunpack.c.l.b16 %v39
    %v127 = vunpack.c.h.b16 %v39
    %v128 = vunpack.c.l.b16 %v40
    %v129 = vunpack.c.l.b16 %v41
    %v130 = vunpack.c.h.b16 %v41
    %v131 = vunpack.c.l.b16 %v42
    %v132 = vunpack.c.l.b16 %v43
    %v133 = vunpack.c.h.b16 %v43
    %v134 = vunpack.c.l.b16 %v44
    %v135 = vunpack.c.l.b16 %v45
    %v136 = vunpack.c.h.b16 %v45
    %v137 = vunpack.c.l.b16 %v46
    %v138 = vunpack.c.l.b16 %v47
    %v139 = vunpack.c.h.b16 %v47
    %v140 = vunpack.c.l.b16 %v48
    %v141 = vunpack.c.l.b16 %v49
    %v142 = vunpack.c.h.b16 %v49
    %v143 = vunpack.c.l.b16 %v50
    %v144 = vunpack.c.l.b16 %v51
    %v145 = vunpack.c.h.b16 %v51
    %v146 = vunpack.c.l.b16 %v52
    %v147 = vunpack.c.l.b16 %v53
    %v148 = vunpack.c.h.b16 %v53
    %v149 = vunpack.c.l.b16 %v54
    %v150 = vunpack.c.l.b16 %v55
    %v151 = vunpack.c.h.b16 %v55
    %v152 = vunpack.c.l.b16 %v56
    %v153 = vunpack.c.l.b16 %v57
    %v154 = vunpack.c.h.b16 %v57
    %v155 = vunpack.c.l.b16 %v58
    %v156 = vpack.c.b16 %v111, %v108
    %v157 = vpack.c.b16 %v112, %v109
    %v158 = vpack.c.b16 %v113, %v110
    %v159 = vpack.c.b16 %v117, %v114
    %v160 = vpack.c.b16 %v118, %v115
    %v161 = vpack.c.b16 %v119, %v116
    %v162 = vpack.c.b16 %v123, %v120
    %v163 = vpack.c.b16 %v124, %v121
    %v164 = vpack.c.b16 %v125, %v122
    %v165 = vpack.c.b16 %v129, %v126
    %v166 = vpack.c.b16 %v130, %v127
    %v167 = vpack.c.b16 %v131, %v128
    %v168 = vpack.c.b16 %v135, %v132
    %v169 = vpack.c.b16 %v136, %v133
    %v170 = vpack.c.b16 %v137, %v134
    %v171 = vpack.c.b16 %v141, %v138
    %v172 = vpack.c.b16 %v142, %v139
    %v173 = vpack.c.b16 %v143, %v140
    %v174 = vpack.c.b16 %v147, %v144
    %v175 = vpack.c.b16 %v148, %v145
    %v176 = vpack.c.b16 %v149, %v146
    %v177 = vpack.c.b16 %v153, %v150
    %v178 = vpack.c.b16 %v154, %v151
    %v179 = vpack.c.b16 %v155, %v152
    %204 = vmatprep.subr.bf16.mxu0 %v157
    %205 = vmatpush1.bf16.msra.mxu0 %v156
    %206 = vmatprep.subr.bf16.mxu0 %v160
    %207 = vmatpush1.bf16.msra.mxu0 %v159
    %208 = vmatprep.subr.bf16.mxu0 %v163
    %209 = vmatpush1.bf16.msra.mxu0 %v162
    %210 = vmatprep.subr.bf16.mxu0 %v166
    %211 = vmatpush1.bf16.msra.mxu0 %v165
    %212 = vmatprep.subr.bf16.mxu0 %v169
    %213 = vmatpush1.bf16.msra.mxu0 %v168
    %214 = vmatprep.subr.bf16.mxu0 %v172
    %215 = vmatpush1.bf16.msra.mxu0 %v171
    %216 = vmatprep.subr.bf16.mxu0 %v175
    %217 = vmatpush1.bf16.msra.mxu0 %v174
    %218 = vmatprep.subr.bf16.mxu0 %v178
    %219 = vmatpush1.bf16.msra.mxu0 %v177
    %220 = vmatprep.subr.bf16.mxu0 0
    %221 = vmatpush1.bf16.msra.mxu0 0
    %222 = vmatprep.subr.bf16.mxu0 0
    %223 = vmatpush1.bf16.msra.mxu0 0
    %224 = vmatprep.subr.bf16.mxu0 0
    %225 = vmatpush1.bf16.msra.mxu0 0
    %226 = vmatprep.subr.bf16.mxu0 0
    %227 = vmatpush1.bf16.msra.mxu0 0
    %228 = vmatprep.subr.bf16.mxu0 0
    %229 = vmatpush1.bf16.msra.mxu0 0
    %230 = vmatprep.subr.bf16.mxu0 0
    %231 = vmatpush1.bf16.msra.mxu0 0
    %232 = vmatprep.subr.bf16.mxu0 0
    %233 = vmatpush1.bf16.msra.mxu0 0
    %234 = vmatprep.subr.bf16.mxu0 0
    %235 = vmatpush1.bf16.msra.mxu0 0
    %236 = vmatprep.mubr.bf16.mxu0 0
    %237 = vmatmul.mubr.bf16.gmra.mrb[0].mxu0 %v26
    %v238 = vpop.f32.mrb[0].mxu0
    %v239 = vadd.f32 %v64, %v238
    %v240 = vpop.f32.mrb[0].mxu0
    %v241 = vadd.f32 %v68, %v240
    %v242 = vpop.f32.mrb[0].mxu0
    %v243 = vpop.f32.mrb[0].mxu0
    %244 = vdwg.mxu0
    %245 = vmatprep.subr.bf16.mxu0 0
    %246 = vmatpush1.bf16.msra.mxu0 %v158
    %247 = vmatprep.subr.bf16.mxu0 0
    %248 = vmatpush1.bf16.msra.mxu0 %v161
    %249 = vmatprep.subr.bf16.mxu0 0
    %250 = vmatpush1.bf16.msra.mxu0 %v164
    %251 = vmatprep.subr.bf16.mxu0 0
    %252 = vmatpush1.bf16.msra.mxu0 %v167
    %253 = vmatprep.subr.bf16.mxu0 0
    %254 = vmatpush1.bf16.msra.mxu0 %v170
    %255 = vmatprep.subr.bf16.mxu0 0
    %256 = vmatpush1.bf16.msra.mxu0 %v173
    %257 = vmatprep.subr.bf16.mxu0 0
    %258 = vmatpush1.bf16.msra.mxu0 %v176
    %259 = vmatprep.subr.bf16.mxu0 0
    %260 = vmatpush1.bf16.msra.mxu0 %v179
    %261 = vmatprep.subr.bf16.mxu0 0
    %262 = vmatpush1.bf16.msra.mxu0 0
    %263 = vmatprep.subr.bf16.mxu0 0
    %264 = vmatpush1.bf16.msra.mxu0 0
    %265 = vmatprep.subr.bf16.mxu0 0
    %266 = vmatpush1.bf16.msra.mxu0 0
    %267 = vmatprep.subr.bf16.mxu0 0
    %268 = vmatpush1.bf16.msra.mxu0 0
    %269 = vmatprep.subr.bf16.mxu0 0
    %270 = vmatpush1.bf16.msra.mxu0 0
    %271 = vmatprep.subr.bf16.mxu0 0
    %272 = vmatpush1.bf16.msra.mxu0 0
    %273 = vmatprep.subr.bf16.mxu0 0
    %274 = vmatpush1.bf16.msra.mxu0 0
    %275 = vmatprep.subr.bf16.mxu0 0
    %276 = vmatpush1.bf16.msra.mxu0 0
    %277 = vmatprep.mubr.bf16.mxu0 0
    %278 = vmatmul.mubr.bf16.gmra.mrb[0].mxu0 %v26
    %v279 = vpop.f32.mrb[0].mxu0
    %v280 = vadd.f32 %v72, %v279
    %v281 = vpop.f32.mrb[0].mxu0
    %v282 = vpop.f32.mrb[0].mxu0
    %v283 = vpop.f32.mrb[0].mxu0
    %284 = vdwg.mxu0
    %v285 = vpack.c.bf16 %v25, %v25
    %v286 = vld [vmem:[%s3] sm:$0xff]
    %v287 = vld [vmem:[%s3 + $0x8] sm:$0xf]
    %v288 = vld [vmem:[%s3 + $0xc] sm:$0xff]
    %v289 = vld [vmem:[%s3 + $0x14] sm:$0xf]
    %v290 = vld [vmem:[%s3 + $0x18] sm:$0xff]
    %v291 = vld [vmem:[%s3 + $0x20] sm:$0xf]
    %v292 = vld [vmem:[%s3 + $0x24] sm:$0xff]
    %v293 = vld [vmem:[%s3 + $0x2c] sm:$0xf]
    %v294 = vld [vmem:[%s3 + $0x30] sm:$0xff]
    %v295 = vld [vmem:[%s3 + $0x38] sm:$0xf]
    %v296 = vld [vmem:[%s3 + $0x3c] sm:$0xff]
    %v297 = vld [vmem:[%s3 + $0x44] sm:$0xf]
    %v298 = vld [vmem:[%s3 + $0x48] sm:$0xff]
    %v299 = vld [vmem:[%s3 + $0x50] sm:$0xf]
    %v300 = vld [vmem:[%s3 + $0x54] sm:$0xff]
    %v301 = vld [vmem:[%s3 + $0x5c] sm:$0xf]
    %v302 = vld [vmem:[%s3 + $0x60] sm:$0xff]
    %v303 = vld [vmem:[%s3 + $0x68] sm:$0xf]
    %v304 = vld [vmem:[%s3 + $0x6c] sm:$0xff]
    %v305 = vld [vmem:[%s3 + $0x74] sm:$0xf]
    %v306 = vld [vmem:[%s3 + $0x78] sm:$0xff]
    %v307 = vld [vmem:[%s3 + $0x80] sm:$0xf]
    %v308 = vld [vmem:[%s3 + $0x84] sm:$0xff]
    %v309 = vld [vmem:[%s3 + $0x8c] sm:$0xf]
    %v310 = vld [vmem:[%s3 + $0x90] sm:$0xff]
    %v311 = vld [vmem:[%s3 + $0x98] sm:$0xf]
    %v312 = vld [vmem:[%s3 + $0x9c] sm:$0xff]
    %v313 = vld [vmem:[%s3 + $0xa4] sm:$0xf]
    %v314 = vld [vmem:[%s3 + $0xa8] sm:$0xff]
    %v315 = vld [vmem:[%s3 + $0xb0] sm:$0xf]
    %v316 = vld [vmem:[%s3 + $0xb4] sm:$0xff]
    %v317 = vld [vmem:[%s3 + $0xbc] sm:$0xf]
    %v318 = vld [vmem:[%s5] sm:$0x7]
    %v320 = vlaneseq
    %v321 = vshrl.u32 %v320, 7
    %v322 = vsub.s32 0, %v321
    %v323 = vrot.slane %v318, %v322
    %v324 = vlaneseq
    %v325 = vshrl.u32 %v324, 7
    %v326 = vsub.s32 1, %v325
    %v327 = vrot.slane %v318, %v326
    %v328 = vlaneseq
    %v329 = vshrl.u32 %v328, 7
    %v330 = vsub.s32 2, %v329
    %v331 = vrot.slane %v318, %v330
    %v367 = vunpack.c.l.b16 %v286
    %v368 = vunpack.c.h.b16 %v286
    %v369 = vunpack.c.l.b16 %v287
    %v370 = vunpack.c.l.b16 %v288
    %v371 = vunpack.c.h.b16 %v288
    %v372 = vunpack.c.l.b16 %v289
    %v373 = vunpack.c.l.b16 %v290
    %v374 = vunpack.c.h.b16 %v290
    %v375 = vunpack.c.l.b16 %v291
    %v376 = vunpack.c.l.b16 %v292
    %v377 = vunpack.c.h.b16 %v292
    %v378 = vunpack.c.l.b16 %v293
    %v379 = vunpack.c.l.b16 %v294
    %v380 = vunpack.c.h.b16 %v294
    %v381 = vunpack.c.l.b16 %v295
    %v382 = vunpack.c.l.b16 %v296
    %v383 = vunpack.c.h.b16 %v296
    %v384 = vunpack.c.l.b16 %v297
    %v385 = vunpack.c.l.b16 %v298
    %v386 = vunpack.c.h.b16 %v298
    %v387 = vunpack.c.l.b16 %v299
    %v388 = vunpack.c.l.b16 %v300
    %v389 = vunpack.c.h.b16 %v300
    %v390 = vunpack.c.l.b16 %v301
    %v391 = vunpack.c.l.b16 %v302
    %v392 = vunpack.c.h.b16 %v302
    %v393 = vunpack.c.l.b16 %v303
    %v394 = vunpack.c.l.b16 %v304
    %v395 = vunpack.c.h.b16 %v304
    %v396 = vunpack.c.l.b16 %v305
    %v397 = vunpack.c.l.b16 %v306
    %v398 = vunpack.c.h.b16 %v306
    %v399 = vunpack.c.l.b16 %v307
    %v400 = vunpack.c.l.b16 %v308
    %v401 = vunpack.c.h.b16 %v308
    %v402 = vunpack.c.l.b16 %v309
    %v403 = vunpack.c.l.b16 %v310
    %v404 = vunpack.c.h.b16 %v310
    %v405 = vunpack.c.l.b16 %v311
    %v406 = vunpack.c.l.b16 %v312
    %v407 = vunpack.c.h.b16 %v312
    %v408 = vunpack.c.l.b16 %v313
    %v409 = vunpack.c.l.b16 %v314
    %v410 = vunpack.c.h.b16 %v314
    %v411 = vunpack.c.l.b16 %v315
    %v412 = vunpack.c.l.b16 %v316
    %v413 = vunpack.c.h.b16 %v316
    %v414 = vunpack.c.l.b16 %v317
    %v415 = vpack.c.b16 %v370, %v367
    %v416 = vpack.c.b16 %v371, %v368
    %v417 = vpack.c.b16 %v372, %v369
    %v418 = vpack.c.b16 %v376, %v373
    %v419 = vpack.c.b16 %v377, %v374
    %v420 = vpack.c.b16 %v378, %v375
    %v421 = vpack.c.b16 %v382, %v379
    %v422 = vpack.c.b16 %v383, %v380
    %v423 = vpack.c.b16 %v384, %v381
    %v424 = vpack.c.b16 %v388, %v385
    %v425 = vpack.c.b16 %v389, %v386
    %v426 = vpack.c.b16 %v390, %v387
    %v427 = vpack.c.b16 %v394, %v391
    %v428 = vpack.c.b16 %v395, %v392
    %v429 = vpack.c.b16 %v396, %v393
    %v430 = vpack.c.b16 %v400, %v397
    %v431 = vpack.c.b16 %v401, %v398
    %v432 = vpack.c.b16 %v402, %v399
    %v433 = vpack.c.b16 %v406, %v403
    %v434 = vpack.c.b16 %v407, %v404
    %v435 = vpack.c.b16 %v408, %v405
    %v436 = vpack.c.b16 %v412, %v409
    %v437 = vpack.c.b16 %v413, %v410
    %v438 = vpack.c.b16 %v414, %v411
    %463 = vmatprep.subr.bf16.mxu0 %v416
    %464 = vmatpush1.bf16.msra.mxu0 %v415
    %465 = vmatprep.subr.bf16.mxu0 %v419
    %466 = vmatpush1.bf16.msra.mxu0 %v418
    %467 = vmatprep.subr.bf16.mxu0 %v422
    %468 = vmatpush1.bf16.msra.mxu0 %v421
    %469 = vmatprep.subr.bf16.mxu0 %v425
    %470 = vmatpush1.bf16.msra.mxu0 %v424
    %471 = vmatprep.subr.bf16.mxu0 %v428
    %472 = vmatpush1.bf16.msra.mxu0 %v427
    %473 = vmatprep.subr.bf16.mxu0 %v431
    %474 = vmatpush1.bf16.msra.mxu0 %v430
    %475 = vmatprep.subr.bf16.mxu0 %v434
    %476 = vmatpush1.bf16.msra.mxu0 %v433
    %477 = vmatprep.subr.bf16.mxu0 %v437
    %478 = vmatpush1.bf16.msra.mxu0 %v436
    %479 = vmatprep.subr.bf16.mxu0 0
    %480 = vmatpush1.bf16.msra.mxu0 0
    %481 = vmatprep.subr.bf16.mxu0 0
    %482 = vmatpush1.bf16.msra.mxu0 0
    %483 = vmatprep.subr.bf16.mxu0 0
    %484 = vmatpush1.bf16.msra.mxu0 0
    %485 = vmatprep.subr.bf16.mxu0 0
    %486 = vmatpush1.bf16.msra.mxu0 0
    %487 = vmatprep.subr.bf16.mxu0 0
    %488 = vmatpush1.bf16.msra.mxu0 0
    %489 = vmatprep.subr.bf16.mxu0 0
    %490 = vmatpush1.bf16.msra.mxu0 0
    %491 = vmatprep.subr.bf16.mxu0 0
    %492 = vmatpush1.bf16.msra.mxu0 0
    %493 = vmatprep.subr.bf16.mxu0 0
    %494 = vmatpush1.bf16.msra.mxu0 0
    %495 = vmatprep.mubr.bf16.mxu0 0
    %496 = vmatmul.mubr.bf16.gmra.mrb[0].mxu0 %v285
    %v497 = vpop.f32.mrb[0].mxu0
    %v498 = vadd.f32 %v323, %v497
    %v499 = vpop.f32.mrb[0].mxu0
    %v500 = vadd.f32 %v327, %v499
    %v501 = vpop.f32.mrb[0].mxu0
    %v502 = vpop.f32.mrb[0].mxu0
    %503 = vdwg.mxu0
    %504 = vmatprep.subr.bf16.mxu0 0
    %505 = vmatpush1.bf16.msra.mxu0 %v417
    %506 = vmatprep.subr.bf16.mxu0 0
    %507 = vmatpush1.bf16.msra.mxu0 %v420
    %508 = vmatprep.subr.bf16.mxu0 0
    %509 = vmatpush1.bf16.msra.mxu0 %v423
    %510 = vmatprep.subr.bf16.mxu0 0
    %511 = vmatpush1.bf16.msra.mxu0 %v426
    %512 = vmatprep.subr.bf16.mxu0 0
    %513 = vmatpush1.bf16.msra.mxu0 %v429
    %514 = vmatprep.subr.bf16.mxu0 0
    %515 = vmatpush1.bf16.msra.mxu0 %v432
    %516 = vmatprep.subr.bf16.mxu0 0
    %517 = vmatpush1.bf16.msra.mxu0 %v435
    %518 = vmatprep.subr.bf16.mxu0 0
    %519 = vmatpush1.bf16.msra.mxu0 %v438
    %520 = vmatprep.subr.bf16.mxu0 0
    %521 = vmatpush1.bf16.msra.mxu0 0
    %522 = vmatprep.subr.bf16.mxu0 0
    %523 = vmatpush1.bf16.msra.mxu0 0
    %524 = vmatprep.subr.bf16.mxu0 0
    %525 = vmatpush1.bf16.msra.mxu0 0
    %526 = vmatprep.subr.bf16.mxu0 0
    %527 = vmatpush1.bf16.msra.mxu0 0
    %528 = vmatprep.subr.bf16.mxu0 0
    %529 = vmatpush1.bf16.msra.mxu0 0
    %530 = vmatprep.subr.bf16.mxu0 0
    %531 = vmatpush1.bf16.msra.mxu0 0
    %532 = vmatprep.subr.bf16.mxu0 0
    %533 = vmatpush1.bf16.msra.mxu0 0
    %534 = vmatprep.subr.bf16.mxu0 0
    %535 = vmatpush1.bf16.msra.mxu0 0
    %536 = vmatprep.mubr.bf16.mxu0 0
    %537 = vmatmul.mubr.bf16.gmra.mrb[0].mxu0 %v285
    %v538 = vpop.f32.mrb[0].mxu0
    %v539 = vadd.f32 %v331, %v538
    %v540 = vpop.f32.mrb[0].mxu0
    %v541 = vpop.f32.mrb[0].mxu0
    %v542 = vpop.f32.mrb[0].mxu0
    %543 = vdwg.mxu0
    %v544 = vadd.f32 %v239, %v498
    %v545 = vxor.u32 %v544, 2147483648
    %v546 = vmul.f32 %v545, 1.442695
    %v547 = vpow.pop %v546
    %v548 = vadd.f32 %v547, 1.0
    %v549 = vrcp.pop %v548
    %v550 = vmul.f32 1.0, %v549
    %v551 = vadd.f32 %v241, %v500
    %v552 = vxor.u32 %v551, 2147483648
    %v553 = vmul.f32 %v552, 1.442695
    %v554 = vpow.pop %v553
    %v555 = vadd.f32 %v554, 1.0
    %v556 = vrcp.pop %v555
    %v557 = vmul.f32 1.0, %v556
    %v558 = vmul.f32 %v550, %v539
    %v559 = vadd.f32 %v280, %v558
    %v560 = vtanh.pop %v559
    %v561 = vsub.f32 %v25, %v560
    %v562 = vmul.f32 %v557, %v561
    %v563 = vadd.f32 %v560, %v562
    %564 = vst [vmem:[#allocation2] sm:$0xff] %v563
    // Predicated region
    $region26: #{_lambda_.1} parent=1 // pred_check
      _
    $region27: #{_lambda_.1} parent=1 // pred_check_branch
      %566 = sbr.rel (0) target = $region29
    $region28: #{_lambda_.1} parent=1 // pred_region
      %s568 = ssub.s32 128, 128
      %569 = vsyncadd [#allocation3], %s568
      %s571 = sshll.u32 [#allocation2], 4
      %s572 = int_to_ptr.vmem [resolvable:$true] %s571
      %574 = dma.vmem_to_hbm [thread:$0]  %s572, 128, %s6, [#allocation3]
    $region29: #{_lambda_.1} parent=1 // pred_fallthru
      _
    // Predicated region
    $region30: #{_lambda_.1} parent=1 // pred_check
      _
    $region31: #{_lambda_.1} parent=1 // pred_check_branch
      %576 = sbr.rel (0) target = $region33
    $region32: #{_lambda_.1} parent=1 // pred_region
      %577 = dma.done [#allocation3], 128
    $region33: #{_lambda_.1} parent=1 // pred_fallthru
      _
    %578 = vsyncpa [#allocation3], 1

</llo_original>
